<compile_context>
chip_gen: v6e
topology: v6e:2x2x1
jax: 0.10.0
libtpu: 0.0.40
codegen_flags: <defaults>
</compile_context>

<pallas_src>
import functools
import math

import jax
import jax.numpy as jnp
from jax.experimental import pallas as pl
from jax.experimental.pallas import tpu as pltpu


# ------------------------- Kernel 1: E/F compression + K/V linears -------------------------

def _compress_kernel(key_ref, val_ref, e_ref, f_ref,
                     wkT_ref, bk_ref, wvT_ref, bv_ref,
                     ko_ref, vo_ref, acc_k, acc_v):
    step = pl.program_id(1)

    @pl.when(step == 0)
    def _init():
        acc_k[...] = jnp.zeros_like(acc_k)
        acc_v[...] = jnp.zeros_like(acc_v)

    kt = key_ref[0].astype(jnp.bfloat16)          # (ts, d)
    vt = val_ref[0].astype(jnp.bfloat16)          # (ts, d)
    # E/F tiles are already bf16; accumulate the S-contraction in f32.
    acc_k[...] += jnp.dot(e_ref[...], kt, preferred_element_type=jnp.float32)
    acc_v[...] += jnp.dot(f_ref[...], vt, preferred_element_type=jnp.float32)

    @pl.when(step == pl.num_programs(1) - 1)
    def _finalize():
        ko_ref[0] = jnp.dot(acc_k[...].astype(jnp.bfloat16), wkT_ref[...],
                            preferred_element_type=jnp.float32) + bk_ref[...]
        vo_ref[0] = jnp.dot(acc_v[...].astype(jnp.bfloat16), wvT_ref[...],
                            preferred_element_type=jnp.float32) + bv_ref[...]


# ------------------------- Kernel 2: Q linear + attention + residual + LayerNorm -------------------------

def _attn_ln_kernel(q_ref, kc_ref, vc_ref, wqT_ref, bq_ref, g_ref, bt_ref, o_ref, *,
                    n_head, head_dim, rows_per_head, keys_per_head, scale):
    bf16 = jnp.bfloat16
    q_in = q_ref[0]                               # (tq, d) f32 -- also the residual
    tq = q_in.shape[0]

    # Q projection on the MXU (bf16 operands, f32 accumulation); fold in 1/sqrt(hd).
    qp = jnp.dot(q_in.astype(bf16), wqT_ref[...],
                 preferred_element_type=jnp.float32) + bq_ref[...]
    qp = qp * scale

    kc = kc_ref[0].astype(bf16)                   # (kp, d)
    vc = vc_ref[0].astype(bf16)                   # (kp, d)
    kp = kc.shape[0]

    # Block-diagonal head mask: query row r belongs to head r // rows_per_head,
    # compressed row k belongs to head k // keys_per_head (see module docstring).
    row = pl.program_id(1) * tq + jax.lax.broadcasted_iota(jnp.int32, (tq, kp), 0)
    col = jax.lax.broadcasted_iota(jnp.int32, (tq, kp), 1)
    same_head = (row // rows_per_head) == (col // keys_per_head)

    out_cols = []
    for v in range(n_head):
        qv = qp[:, v * head_dim:(v + 1) * head_dim].astype(bf16)        # (tq, hd)
        logits = []
        for x in range(n_head):
            kx = kc[:, x * head_dim:(x + 1) * head_dim]                 # (kp, hd)
            sx = jax.lax.dot_general(qv, kx, (((1,), (1,)), ((), ())),
                                     preferred_element_type=jnp.float32)  # (tq, kp)
            logits.append(jnp.where(same_head, sx, -1e30))
        # Numerically stable softmax over all (x, valid-k) keys of this row's head.
        m = logits[0]
        for x in range(1, n_head):
            m = jnp.maximum(m, logits[x])
        m = jnp.max(m, axis=-1, keepdims=True)                          # (tq, 1)
        num = jnp.zeros((tq, head_dim), jnp.float32)
        den = jnp.zeros((tq, 1), jnp.float32)
        for x in range(n_head):
            p = jnp.exp(logits[x] - m)                                  # (tq, kp)
            den = den + jnp.sum(p, axis=-1, keepdims=True)
            num = num + jnp.dot(p.astype(bf16),
                                vc[:, x * head_dim:(x + 1) * head_dim],
                                preferred_element_type=jnp.float32)
        out_cols.append(num * pl.reciprocal(den, approx=True))
    attn = jnp.concatenate(out_cols, axis=-1)                           # (tq, d)
    # TODO(synk): nn.Dropout treated as identity (inference / p=0.0).

    # Residual + LayerNorm (eps=1e-5, biased variance, matching PyTorch).
    x = attn + q_in
    mean = jnp.mean(x, axis=-1, keepdims=True)
    var = jnp.mean((x - mean) ** 2, axis=-1, keepdims=True)
    inv = jax.lax.rsqrt(var + 1e-5)
    o_ref[0] = (x - mean) * inv * g_ref[...] + bt_ref[...]


# ------------------------- Wrapper -------------------------

def linformer_self_attention(query, key, value, params, *, n_head, head_dim,
                             block_q=None, block_kv=None):
    B, S, d = query.shape
    kp = params['e_w'].shape[0]
    H = n_head
    f32, bf16 = jnp.float32, jnp.bfloat16

    assert d == H * head_dim
    assert S % H == 0 and kp % H == 0, (
        "row-block realization of torch's .view head split needs S and proj_k "
        "divisible by n_head")

    # --- tile sizes ---
    if block_q is None:                       # query/output S tile (parallel axis)
        block_q = S if S <= 256 else 256
    if block_q != S:
        assert S % block_q == 0 and block_q % 8 == 0
    if block_kv is None:                      # key/value S tile (reduction axis)
        block_kv = S if S <= 1024 else 512
    if block_kv != S:
        assert S % block_kv == 0 and block_kv % 128 == 0

    # --- parameter prep (tiny, done once in the wrapper) ---
    e_w = params['e_w'].astype(bf16)                  # (kp, S)
    f_w = params['f_w'].astype(bf16)                  # (kp, S)
    wq_t = params['wq'].T.astype(bf16)                # (d, d)
    wk_t = params['wk'].T.astype(bf16)
    wv_t = params['wv'].T.astype(bf16)
    bq = params['bq'].reshape(1, d).astype(f32)
    # Fold the E/F row biases through Wk/Wv:  (E@key + e_b 1^T) Wk^T + bk
    #   = E@key@Wk^T + e_b (x) rowsum(Wk) + bk
    bk_eff = (params['e_b'][:, None] * params['wk'].sum(axis=1)[None, :]
              + params['bk'][None, :]).astype(f32)    # (kp, d)
    bv_eff = (params['f_b'][:, None] * params['wv'].sum(axis=1)[None, :]
              + params['bv'][None, :]).astype(f32)    # (kp, d)
    gamma = params['gamma'].reshape(1, d).astype(f32)
    beta = params['beta'].reshape(1, d).astype(f32)

    cparams_a = pltpu.CompilerParams(
        dimension_semantics=("parallel", "arbitrary"),
        vmem_limit_bytes=64 * 1024 * 1024)
    cparams_b = pltpu.CompilerParams(
        dimension_semantics=("parallel", "parallel"),
        vmem_limit_bytes=64 * 1024 * 1024)

    # ---- Kernel 1: compressed K/V (tiny (B, kp, d) intermediates only) ----
    n_red = S // block_kv
    k_cmp, v_cmp = pl.pallas_call(
        _compress_kernel,
        out_shape=(jax.ShapeDtypeStruct((B, kp, d), f32),
                   jax.ShapeDtypeStruct((B, kp, d), f32)),
        grid=(B, n_red),
        in_specs=[
            pl.BlockSpec((1, block_kv, d), lambda b, s: (b, s, 0)),   # key
            pl.BlockSpec((1, block_kv, d), lambda b, s: (b, s, 0)),   # value
            pl.BlockSpec((kp, block_kv), lambda b, s: (0, s)),        # E
            pl.BlockSpec((kp, block_kv), lambda b, s: (0, s)),        # F
            pl.BlockSpec((d, d), lambda b, s: (0, 0)),                # Wk^T
            pl.BlockSpec((kp, d), lambda b, s: (0, 0)),               # folded k bias
            pl.BlockSpec((d, d), lambda b, s: (0, 0)),                # Wv^T
            pl.BlockSpec((kp, d), lambda b, s: (0, 0)),               # folded v bias
        ],
        out_specs=(pl.BlockSpec((1, kp, d), lambda b, s: (b, 0, 0)),
                   pl.BlockSpec((1, kp, d), lambda b, s: (b, 0, 0))),
        scratch_shapes=[pltpu.VMEM((kp, d), f32), pltpu.VMEM((kp, d), f32)],
        compiler_params=cparams_a,
    )(key, value, e_w, f_w, wk_t, bk_eff, wv_t, bv_eff)

    # ---- Kernel 2: Q linear + attention + head merge + residual + LayerNorm ----
    n_qt = S // block_q
    out = pl.pallas_call(
        functools.partial(_attn_ln_kernel,
                          n_head=H, head_dim=head_dim,
                          rows_per_head=S // H, keys_per_head=kp // H,
                          scale=1.0 / math.sqrt(head_dim)),
        out_shape=jax.ShapeDtypeStruct((B, S, d), f32),
        grid=(B, n_qt),
        in_specs=[
            pl.BlockSpec((1, block_q, d), lambda b, s: (b, s, 0)),    # query
            pl.BlockSpec((1, kp, d), lambda b, s: (b, 0, 0)),         # compressed K
            pl.BlockSpec((1, kp, d), lambda b, s: (b, 0, 0)),         # compressed V
            pl.BlockSpec((d, d), lambda b, s: (0, 0)),                # Wq^T
            pl.BlockSpec((1, d), lambda b, s: (0, 0)),                # bq
            pl.BlockSpec((1, d), lambda b, s: (0, 0)),                # gamma
            pl.BlockSpec((1, d), lambda b, s: (0, 0)),                # beta
        ],
        out_specs=pl.BlockSpec((1, block_q, d), lambda b, s: (b, s, 0)),
        compiler_params=cparams_b,
    )(query, k_cmp, v_cmp, wq_t, bq, gamma, beta)

    return out


# ------------------------- Pure-JAX reference (for sanity check) -------------------------

def reference(query, key, value, p, *, n_head, head_dim):
    B, S, d = query.shape
    hp = jax.lax.Precision.HIGHEST
    klow = jnp.einsum('ks,bsd->bkd', p['e_w'], key, precision=hp) + p['e_b'][None, :, None]
    vlow = jnp.einsum('ks,bsd->bkd', p['f_w'], value, precision=hp) + p['f_b'][None, :, None]
    qp = jnp.einsum('bsd,ed->bse', query, p['wq'], precision=hp) + p['bq']
    kq = jnp.einsum('bkd,ed->bke', klow, p['wk'], precision=hp) + p['bk']
    vq = jnp.einsum('bkd,ed->bke', vlow, p['wv'], precision=hp) + p['bv']
    K = kq.shape[1]
    qh = qp.reshape(B, n_head, S, head_dim)
    kh = kq.reshape(B, n_head, K, head_dim)
    vh = vq.reshape(B, n_head, K, head_dim)
    s = jnp.einsum('bhqc,bhkc->bhqk', qh, kh, precision=hp) / math.sqrt(head_dim)
    pr = jax.nn.softmax(s, axis=-1)
    o = jnp.einsum('bhqk,bhkc->bhqc', pr, vh, precision=hp)
    x = o.reshape(B, S, d) + query
    mean = x.mean(-1, keepdims=True)
    var = ((x - mean) ** 2).mean(-1, keepdims=True)
    return (x - mean) / jnp.sqrt(var + 1e-5) * p['gamma'] + p['beta']


# ------------------------- Main -------------------------

if __name__ == "__main__":
    B, S, d_model, n_head, head_dim, proj_k = 2, 16, 32, 4, 8, 8
    assert n_head * head_dim == d_model

    root = jax.random.PRNGKey(0)
    ks = jax.random.split(root, 16)

    def lin(kw, kb, out_dim, in_dim, scale=0.05):
        return (jax.random.normal(kw, (out_dim, in_dim), jnp.float32) * scale,
                jax.random.normal(kb, (out_dim,), jnp.float32) * scale)

    e_w, e_b = lin(ks[0], ks[1], proj_k, S)      # e_weight = Linear(S, proj_k)
    f_w, f_b = lin(ks[2], ks[3], proj_k, S)      # f_weight = Linear(S, proj_k)
    wq, bq = lin(ks[4], ks[5], d_model, d_model)
    wk, bk = lin(ks[6], ks[7], d_model, d_model)
    wv, bv = lin(ks[8], ks[9], d_model, d_model)

    params = dict(e_w=e_w, e_b=e_b, f_w=f_w, f_b=f_b,
                  wq=wq, bq=bq, wk=wk, bk=bk, wv=wv, bv=bv,
                  gamma=jnp.ones((d_model,), jnp.float32),
                  beta=jnp.zeros((d_model,), jnp.float32))

    query = jax.random.normal(ks[10], (B, S, d_model), jnp.float32)
    key_in = jax.random.normal(ks[11], (B, S, d_model), jnp.float32)
    value = jax.random.normal(ks[12], (B, S, d_model), jnp.float32)

    out = linformer_self_attention(query, key_in, value, params,
                                   n_head=n_head, head_dim=head_dim,
                                   block_q=8)       # 2 S-tiles per batch
    out = jax.block_until_ready(out)

    ref = reference(query, key_in, value, params, n_head=n_head, head_dim=head_dim)
    assert out.shape == (B, S, d_model)
    max_err = float(jnp.max(jnp.abs(out - ref)))
    assert jnp.allclose(out, ref, atol=2e-2, rtol=2e-2), f"max abs err {max_err}"

    print("KERNEL_OK")
</pallas_src>

<mosaic_0001>
module attributes {stable_mosaic.version = 11 : i64} {
  func.func @_compress_kernel(%arg0: i32, %arg1: i32, %arg2: memref<1x16x32xf32, #tpu.memory_space<vmem>>, %arg3: memref<1x16x32xf32, #tpu.memory_space<vmem>>, %arg4: memref<8x16xbf16, #tpu.memory_space<vmem>>, %arg5: memref<8x16xbf16, #tpu.memory_space<vmem>>, %arg6: memref<32x32xbf16, #tpu.memory_space<vmem>>, %arg7: memref<8x32xf32, #tpu.memory_space<vmem>>, %arg8: memref<32x32xbf16, #tpu.memory_space<vmem>>, %arg9: memref<8x32xf32, #tpu.memory_space<vmem>>, %arg10: memref<1x8x32xf32, #tpu.memory_space<vmem>>, %arg11: memref<1x8x32xf32, #tpu.memory_space<vmem>>, %arg12: memref<8x32xf32, #tpu.memory_space<vmem>>, %arg13: memref<8x32xf32, #tpu.memory_space<vmem>>) attributes {dimension_semantics = [#tpu.dimension_semantics<parallel>, #tpu.dimension_semantics<arbitrary>], iteration_bounds = array<i64: 2, 1>, scalar_prefetch = 0 : i64, scratch_operands = 2 : i64, tpu.core_type = #tpu.core_type<tc>, window_params = [{transform_indices = @transform_0, window_bounds = array<i64: 1, 16, 32>}, {transform_indices = @transform_1, window_bounds = array<i64: 1, 16, 32>}, {transform_indices = @transform_2, window_bounds = array<i64: 8, 16>}, {transform_indices = @transform_3, window_bounds = array<i64: 8, 16>}, {pipeline_mode = #tpu.pipeline_mode<synchronous>, transform_indices = @transform_4, window_bounds = array<i64: 32, 32>}, {pipeline_mode = #tpu.pipeline_mode<synchronous>, transform_indices = @transform_5, window_bounds = array<i64: 8, 32>}, {pipeline_mode = #tpu.pipeline_mode<synchronous>, transform_indices = @transform_6, window_bounds = array<i64: 32, 32>}, {pipeline_mode = #tpu.pipeline_mode<synchronous>, transform_indices = @transform_7, window_bounds = array<i64: 8, 32>}, {transform_indices = @transform_8, window_bounds = array<i64: 1, 8, 32>}, {transform_indices = @transform_9, window_bounds = array<i64: 1, 8, 32>}]} {
    %c0_i32 = arith.constant 0 : i32
    %0 = arith.cmpi eq, %arg1, %c0_i32 : i32
    %1 = arith.extui %0 : i1 to i32
    %c0_i32_0 = arith.constant 0 : i32
    %2 = arith.cmpi ne, %1, %c0_i32_0 : i32
    scf.if %2 {
      %cst_21 = arith.constant 0.000000e+00 : f32
      %22 = vector.broadcast %cst_21 : f32 to vector<8x32xf32>
      %c0_22 = arith.constant 0 : index
      %c0_23 = arith.constant 0 : index
      %23 = vector.load %arg12[%c0_22, %c0_23] : memref<8x32xf32, #tpu.memory_space<vmem>>, vector<8x32xf32>
      tpu.vector_store %arg12[%c0_22, %c0_23], %22 {strides = array<i32>} : memref<8x32xf32, #tpu.memory_space<vmem>>, vector<8x32xf32>,
      %cst_24 = arith.constant 0.000000e+00 : f32
      %24 = vector.broadcast %cst_24 : f32 to vector<8x32xf32>
      %c0_25 = arith.constant 0 : index
      %c0_26 = arith.constant 0 : index
      %25 = vector.load %arg13[%c0_25, %c0_26] : memref<8x32xf32, #tpu.memory_space<vmem>>, vector<8x32xf32>
      tpu.vector_store %arg13[%c0_25, %c0_26], %24 {strides = array<i32>} : memref<8x32xf32, #tpu.memory_space<vmem>>, vector<8x32xf32>,
    } else {
    }
    %c0 = arith.constant 0 : index
    %c0_1 = arith.constant 0 : index
    %c0_2 = arith.constant 0 : index
    %3 = vector.load %arg2[%c0, %c0_1, %c0_2] : memref<1x16x32xf32, #tpu.memory_space<vmem>>, vector<1x16x32xf32>
    %4 = vector.shape_cast %3 : vector<1x16x32xf32> to vector<16x32xf32>
    %5 = arith.truncf %4 : vector<16x32xf32> to vector<16x32xbf16>
    %c0_3 = arith.constant 0 : index
    %c0_4 = arith.constant 0 : index
    %c0_5 = arith.constant 0 : index
    %6 = vector.load %arg3[%c0_3, %c0_4, %c0_5] : memref<1x16x32xf32, #tpu.memory_space<vmem>>, vector<1x16x32xf32>
    %7 = vector.shape_cast %6 : vector<1x16x32xf32> to vector<16x32xf32>
    %8 = arith.truncf %7 : vector<16x32xf32> to vector<16x32xbf16>
    %c0_6 = arith.constant 0 : index
    %c0_7 = arith.constant 0 : index
    %9 = vector.load %arg12[%c0_6, %c0_7] : memref<8x32xf32, #tpu.memory_space<vmem>>, vector<8x32xf32>
    %c0_8 = arith.constant 0 : index
    %c0_9 = arith.constant 0 : index
    %10 = vector.load %arg4[%c0_8, %c0_9] : memref<8x16xbf16, #tpu.memory_space<vmem>>, vector<8x16xbf16>
    %cst = arith.constant dense<0.000000e+00> : vector<8x32xf32>
    %11 = tpu.matmul %10, %5, %cst {dimension_numbers = #tpu.dot_dimension_numbers<[1], [0], [0], [1], [0, 0, 1, 1], [], []>} : vector<8x16xbf16>, vector<16x32xbf16>, vector<8x32xf32> -> vector<8x32xf32>
    %12 = arith.addf %9, %11 : vector<8x32xf32>
    %c0_10 = arith.constant 0 : index
    %c0_11 = arith.constant 0 : index
    %13 = vector.load %arg12[%c0_10, %c0_11] : memref<8x32xf32, #tpu.memory_space<vmem>>, vector<8x32xf32>
    tpu.vector_store %arg12[%c0_10, %c0_11], %12 {strides = array<i32>} : memref<8x32xf32, #tpu.memory_space<vmem>>, vector<8x32xf32>,
    %c0_12 = arith.constant 0 : index
    %c0_13 = arith.constant 0 : index
    %14 = vector.load %arg13[%c0_12, %c0_13] : memref<8x32xf32, #tpu.memory_space<vmem>>, vector<8x32xf32>
    %c0_14 = arith.constant 0 : index
    %c0_15 = arith.constant 0 : index
    %15 = vector.load %arg5[%c0_14, %c0_15] : memref<8x16xbf16, #tpu.memory_space<vmem>>, vector<8x16xbf16>
    %cst_16 = arith.constant dense<0.000000e+00> : vector<8x32xf32>
    %16 = tpu.matmul %15, %8, %cst_16 {dimension_numbers = #tpu.dot_dimension_numbers<[1], [0], [0], [1], [0, 0, 1, 1], [], []>} : vector<8x16xbf16>, vector<16x32xbf16>, vector<8x32xf32> -> vector<8x32xf32>
    %17 = arith.addf %14, %16 : vector<8x32xf32>
    %c0_17 = arith.constant 0 : index
    %c0_18 = arith.constant 0 : index
    %18 = vector.load %arg13[%c0_17, %c0_18] : memref<8x32xf32, #tpu.memory_space<vmem>>, vector<8x32xf32>
    tpu.vector_store %arg13[%c0_17, %c0_18], %17 {strides = array<i32>} : memref<8x32xf32, #tpu.memory_space<vmem>>, vector<8x32xf32>,
    %c0_i32_19 = arith.constant 0 : i32
    %19 = arith.cmpi eq, %arg1, %c0_i32_19 : i32
    %20 = arith.extui %19 : i1 to i32
    %c0_i32_20 = arith.constant 0 : i32
    %21 = arith.cmpi ne, %20, %c0_i32_20 : i32
    scf.if %21 {
      %c0_21 = arith.constant 0 : index
      %c0_22 = arith.constant 0 : index
      %22 = vector.load %arg12[%c0_21, %c0_22] : memref<8x32xf32, #tpu.memory_space<vmem>>, vector<8x32xf32>
      %23 = arith.truncf %22 : vector<8x32xf32> to vector<8x32xbf16>
      %c0_23 = arith.constant 0 : index
      %c0_24 = arith.constant 0 : index
      %24 = vector.load %arg6[%c0_23, %c0_24] : memref<32x32xbf16, #tpu.memory_space<vmem>>, vector<32x32xbf16>
      %cst_25 = arith.constant dense<0.000000e+00> : vector<8x32xf32>
      %25 = tpu.matmul %23, %24, %cst_25 {dimension_numbers = #tpu.dot_dimension_numbers<[1], [0], [0], [1], [0, 0, 1, 1], [], []>} : vector<8x32xbf16>, vector<32x32xbf16>, vector<8x32xf32> -> vector<8x32xf32>
      %c0_26 = arith.constant 0 : index
      %c0_27 = arith.constant 0 : index
      %26 = vector.load %arg7[%c0_26, %c0_27] : memref<8x32xf32, #tpu.memory_space<vmem>>, vector<8x32xf32>
      %27 = arith.addf %25, %26 : vector<8x32xf32>
      %c0_28 = arith.constant 0 : index
      %c0_29 = arith.constant 0 : index
      %c0_30 = arith.constant 0 : index
      %28 = vector.load %arg10[%c0_28, %c0_29, %c0_30] : memref<1x8x32xf32, #tpu.memory_space<vmem>>, vector<1x8x32xf32>
      %29 = vector.shape_cast %28 : vector<1x8x32xf32> to vector<8x32xf32>
      %30 = vector.shape_cast %27 : vector<8x32xf32> to vector<1x8x32xf32>
      tpu.vector_store %arg10[%c0_28, %c0_29, %c0_30], %30 {strides = array<i32>} : memref<1x8x32xf32, #tpu.memory_space<vmem>>, vector<1x8x32xf32>,
      %c0_31 = arith.constant 0 : index
      %c0_32 = arith.constant 0 : index
      %31 = vector.load %arg13[%c0_31, %c0_32] : memref<8x32xf32, #tpu.memory_space<vmem>>, vector<8x32xf32>
      %32 = arith.truncf %31 : vector<8x32xf32> to vector<8x32xbf16>
      %c0_33 = arith.constant 0 : index
      %c0_34 = arith.constant 0 : index
      %33 = vector.load %arg8[%c0_33, %c0_34] : memref<32x32xbf16, #tpu.memory_space<vmem>>, vector<32x32xbf16>
      %cst_35 = arith.constant dense<0.000000e+00> : vector<8x32xf32>
      %34 = tpu.matmul %32, %33, %cst_35 {dimension_numbers = #tpu.dot_dimension_numbers<[1], [0], [0], [1], [0, 0, 1, 1], [], []>} : vector<8x32xbf16>, vector<32x32xbf16>, vector<8x32xf32> -> vector<8x32xf32>
      %c0_36 = arith.constant 0 : index
      %c0_37 = arith.constant 0 : index
      %35 = vector.load %arg9[%c0_36, %c0_37] : memref<8x32xf32, #tpu.memory_space<vmem>>, vector<8x32xf32>
      %36 = arith.addf %34, %35 : vector<8x32xf32>
      %c0_38 = arith.constant 0 : index
      %c0_39 = arith.constant 0 : index
      %c0_40 = arith.constant 0 : index
      %37 = vector.load %arg11[%c0_38, %c0_39, %c0_40] : memref<1x8x32xf32, #tpu.memory_space<vmem>>, vector<1x8x32xf32>
      %38 = vector.shape_cast %37 : vector<1x8x32xf32> to vector<8x32xf32>
      %39 = vector.shape_cast %36 : vector<8x32xf32> to vector<1x8x32xf32>
      tpu.vector_store %arg11[%c0_38, %c0_39, %c0_40], %39 {strides = array<i32>} : memref<1x8x32xf32, #tpu.memory_space<vmem>>, vector<1x8x32xf32>,
    } else {
    }
    return
  }
  func.func @transform_0(%arg0: i32, %arg1: i32) -> (i32, i32, i32) {
    %c0_i32 = arith.constant 0 : i32
    %c0_i32_0 = arith.constant 0 : i32
    return %arg0, %arg1, %c0_i32 : i32, i32, i32
  }
  func.func @transform_1(%arg0: i32, %arg1: i32) -> (i32, i32, i32) {
    %c0_i32 = arith.constant 0 : i32
    %c0_i32_0 = arith.constant 0 : i32
    return %arg0, %arg1, %c0_i32 : i32, i32, i32
  }
  func.func @transform_2(%arg0: i32, %arg1: i32) -> (i32, i32) {
    %c0_i32 = arith.constant 0 : i32
    %c0_i32_0 = arith.constant 0 : i32
    return %c0_i32, %arg1 : i32, i32
  }
  func.func @transform_3(%arg0: i32, %arg1: i32) -> (i32, i32) {
    %c0_i32 = arith.constant 0 : i32
    %c0_i32_0 = arith.constant 0 : i32
    return %c0_i32, %arg1 : i32, i32
  }
  func.func @transform_4(%arg0: i32, %arg1: i32) -> (i32, i32) {
    %c0_i32 = arith.constant 0 : i32
    %c0_i32_0 = arith.constant 0 : i32
    %c0_i32_1 = arith.constant 0 : i32
    return %c0_i32, %c0_i32_0 : i32, i32
  }
  func.func @transform_5(%arg0: i32, %arg1: i32) -> (i32, i32) {
    %c0_i32 = arith.constant 0 : i32
    %c0_i32_0 = arith.constant 0 : i32
    %c0_i32_1 = arith.constant 0 : i32
    return %c0_i32, %c0_i32_0 : i32, i32
  }
  func.func @transform_6(%arg0: i32, %arg1: i32) -> (i32, i32) {
    %c0_i32 = arith.constant 0 : i32
    %c0_i32_0 = arith.constant 0 : i32
    %c0_i32_1 = arith.constant 0 : i32
    return %c0_i32, %c0_i32_0 : i32, i32
  }
  func.func @transform_7(%arg0: i32, %arg1: i32) -> (i32, i32) {
    %c0_i32 = arith.constant 0 : i32
    %c0_i32_0 = arith.constant 0 : i32
    %c0_i32_1 = arith.constant 0 : i32
    return %c0_i32, %c0_i32_0 : i32, i32
  }
  func.func @transform_8(%arg0: i32, %arg1: i32) -> (i32, i32, i32) {
    %c0_i32 = arith.constant 0 : i32
    %c0_i32_0 = arith.constant 0 : i32
    %c0_i32_1 = arith.constant 0 : i32
    return %arg0, %c0_i32, %c0_i32_0 : i32, i32, i32
  }
  func.func @transform_9(%arg0: i32, %arg1: i32) -> (i32, i32, i32) {
    %c0_i32 = arith.constant 0 : i32
    %c0_i32_0 = arith.constant 0 : i32
    %c0_i32_1 = arith.constant 0 : i32
    return %arg0, %c0_i32, %c0_i32_0 : i32, i32, i32
  }
}

</mosaic_0001>

<llo_original>
// kernel: tpu_custom_call.1
$region0: #{tpu_custom_call.1}
  #allocation0 [shape = 'u32[]', space=smem, size = 0x4, offset = 0x4, fixed_abs, tag = 'smem constant byte address 0x4 - core index']
  #allocation1 [shape = 'u32[144,128]{1,0:T(1,128)}', space=vmem, size = 0x12000, scoped, tag = 'internal scratch']
  #allocation2 [shape = 'f32[8,32]{1,0:T(8,128)}', space=vmem, size = 0x1000, scoped, tag = 'scratch operand']
  #allocation3 [shape = 'f32[8,32]{1,0:T(8,128)}', space=vmem, size = 0x1000, scoped, tag = 'scratch operand']
  %s0 = inlined_call_operand.hbm [shape: f32[2,16,32], index: 0, kind: input, shape index: {}]
  %s1 = inlined_call_operand.hbm [shape: f32[2,16,32], index: 1, kind: input, shape index: {}]
  %s2 = inlined_call_operand.hbm [shape: bf16[8,16], index: 2, kind: input, shape index: {}]
  %s3 = inlined_call_operand.hbm [shape: bf16[8,16], index: 3, kind: input, shape index: {}]
  %s4 = inlined_call_operand.hbm [shape: bf16[32,32], index: 4, kind: input, shape index: {}]
  %s5 = inlined_call_operand.vmem [shape: f32[8,32], index: 5, kind: input, shape index: {}]
  %s6 = inlined_call_operand.hbm [shape: bf16[32,32], index: 6, kind: input, shape index: {}]
  %s7 = inlined_call_operand.hbm [shape: f32[8,32], index: 7, kind: input, shape index: {}]
  %s8 = inlined_call_operand.hbm [shape: f32[2,8,32], index: 8, kind: output, shape index: {0}]
  %s9 = inlined_call_operand.hbm [shape: f32[2,8,32], index: 9, kind: output, shape index: {1}]
  %10 = xla_tuple %s8, %s9
  %s11 = sld [smem:[#allocation0]]
  $region109: #{tpu_custom_call.1} parent=0
    _
  %s13 = ssub.s32 1, %s11
  %s14 = scalar_select 0, %s13, %s11
  $region1: #{tpu_custom_call.1} parent=0
    #allocation4 [shape = 'u8[16384]{0}', space=vmem, size = 0x4000, scoped, tag = 'input window, operand 0']
    #allocation5 [shape = 's32[2]{0}', space=sflag, size = 0x8, scoped, tag = 'scoped memory for tpu_custom_call.1']
    #allocation6 [shape = 's32[2]{0}', space=sflag, size = 0x8, scoped, tag = 'scoped memory for tpu_custom_call.1']
    #allocation7 [shape = 'u8[16384]{0}', space=vmem, size = 0x4000, scoped, tag = 'input window, operand 1']
    #allocation8 [shape = 's32[2]{0}', space=sflag, size = 0x8, scoped, tag = 'scoped memory for tpu_custom_call.1']
    #allocation9 [shape = 'u8[2048]{0}', space=vmem, size = 0x800, scoped, tag = 'input window, operand 2, single buffered']
    #allocation10 [shape = 'u8[2048]{0}', space=vmem, size = 0x800, scoped, tag = 'input window, operand 3, single buffered']
    #allocation11 [shape = 's32[1]{0}', space=sflag, size = 0x4, scoped, tag = 'scoped memory for tpu_custom_call.1']
    #allocation12 [shape = 'u8[8192]{0}', space=vmem, size = 0x2000, scoped, tag = 'input window, operand 4, single buffered']
    #allocation13 [shape = 'u8[8192]{0}', space=vmem, size = 0x2000, scoped, tag = 'input window, operand 6, single buffered']
    #allocation14 [shape = 's32[1]{0}', space=sflag, size = 0x4, scoped, tag = 'scoped memory for tpu_custom_call.1']
    #allocation15 [shape = 'u8[4096]{0}', space=vmem, size = 0x1000, scoped, tag = 'input window, operand 7, single buffered']
    #allocation16 [shape = 'u8[8192]{0}', space=vmem, size = 0x2000, scoped, tag = 'output window, operand 0']
    #allocation17 [shape = 'u8[8192]{0}', space=vmem, size = 0x2000, scoped, tag = 'output window, operand 1']
    #allocation18 [shape = 's32[2]{0}', space=sflag, size = 0x8, scoped, tag = 'scoped memory for tpu_custom_call.1']
    %15 = vsyncpa [#allocation5], 0
    %s16 = scalar_lea.sflag [#allocation5], 1
    %17 = vsyncpa %s16, 0
    %18 = vsyncpa [#allocation8], 0
    %s19 = scalar_lea.sflag [#allocation8], 1
    %20 = vsyncpa %s19, 0
    %21 = vsyncpa [#allocation11], 0
    %22 = vsyncpa [#allocation14], 0
    %23 = vsyncpa [#allocation6], 0
    %s24 = scalar_lea.sflag [#allocation6], 1
    %25 = vsyncpa %s24, 0
    %26 = vsyncpa [#allocation18], 0
    %s27 = scalar_lea.sflag [#allocation18], 1
    %28 = vsyncpa %s27, 0
    loop: start=0, step=1, limit=4
    $region2: #{tpu_custom_call.1} parent=1 // loop_pre_header
      _
    $region3: #{tpu_custom_call.1} parent=1 // loop_header
      %s30 = sphi 0, %s34
      %p31 = scmp.ge.s32.totalorder %s30, 4
      %s37 = sphi 0, %s49
      %s38 = sphi 0, %s45
      %s39 = sphi 0, %s37
      %s40 = sphi 0, %s38
      %s41 = sphi 0, %s39
      %s42 = sphi 0, %s40
      %s54 = sphi 0, %s56
      %s57 = sphi 0, %s54
      %s58 = sphi 0, %s57
      %s74 = sphi 0, %s58
      %s82 = sphi 0, %s84
      %s85 = sphi 0, %s82
      %s86 = sphi 0, %s85
      %s102 = sphi 0, %s86
      %s108 = sphi 0, %s110
      %s111 = sphi 0, %s108
      %s112 = sphi 0, %s111
      %s128 = sphi 0, %s112
      %s134 = sphi 0, %s136
      %s137 = sphi 0, %s134
      %s138 = sphi 0, %s137
      %s154 = sphi 0, %s138
      %s158 = sphi 0, %s158
      %s160 = sphi 0, %s158
      %s161 = sphi 0, %s160
      %s175 = sphi 0, %s161
      %s179 = sphi 0, %s179
      %s181 = sphi 0, %s179
      %s182 = sphi 0, %s181
      %s196 = sphi 0, %s182
      %s200 = sphi 0, %s200
      %s202 = sphi 0, %s200
      %s203 = sphi 0, %s202
      %s217 = sphi 0, %s203
      %s221 = sphi 0, %s221
      %s223 = sphi 0, %s221
      %s224 = sphi 0, %s223
      %s238 = sphi 0, %s224
      %s244 = sphi 0, %s246
      %s247 = sphi 0, %s244
      %s248 = sphi 0, %s247
      %s264 = sphi 0, %s248
      %s270 = sphi 0, %s272
      %s273 = sphi 0, %s270
      %s274 = sphi 0, %s273
      %s290 = sphi 0, %s274
    $region4: #{tpu_custom_call.1} parent=1 // loop_header_branch
      %33 = sbr.rel (%p31) target = $region8
    $region5: #{tpu_custom_call.1} parent=1 // loop_body
      %s35 = ssub.s32 %s30, 1
      %s36 = ssub.s32 %s30, 2
      %s43 = sadd.s32 1, %s38
      %p44 = scmp.ge.s32.totalorder %s43, 1
      %s45 = scalar_select %p44, 0, %s43
      %s46 = sadd.s32 1, %s37
      %s47 = scalar_select %p44, %s46, %s37
      %p48 = scmp.ge.s32.totalorder %s47, 2
      %s49 = scalar_select %p48, 0, %s47
      %s50 = ssub.s32 %s37, %s49
      %s51 = ssub.s32 %s38, %s45
      %s52 = sor.u32 %s50, %s51
      %p53 = scmp.eq.s32.totalorder %s52, 0
      %s55 = sadd.s32 %s54, 1
      %s56 = scalar_select %p53, %s54, %s55
      %p59 = pneg %p53
      %p60 = scmp.eq.s32.totalorder %s30, 1
      %p61 = por %p59, %p60
      %p62 = scmp.ne.s32.totalorder %s54, %s57
      %p63 = scmp.eq.s32.totalorder %s30, 0
      %p64 = por %p62, %p63
      %p65 = scmp.ne.s32.totalorder %s54, %s57
      %p66 = scmp.eq.s32.totalorder %s35, 1
      %p67 = por %p65, %p66
      %p68 = scmp.ne.s32.totalorder %s57, %s58
      %p69 = scmp.eq.s32.totalorder %s35, 0
      %p70 = por %p68, %p69
      %p71 = scmp.ne.s32.totalorder %s57, %s58
      %p72 = scmp.eq.s32.totalorder %s36, 1
      %p73 = por %p71, %p72
      %p75 = scmp.ne.s32.totalorder %s58, %s74
      %p76 = scmp.eq.s32.totalorder %s36, 0
      %p77 = por %p75, %p76
      %s78 = ssub.s32 %s37, %s49
      %s79 = ssub.s32 %s38, %s45
      %s80 = sor.u32 %s78, %s79
      %p81 = scmp.eq.s32.totalorder %s80, 0
      %s83 = sadd.s32 %s82, 1
      %s84 = scalar_select %p81, %s82, %s83
      %p87 = pneg %p81
      %p88 = scmp.eq.s32.totalorder %s30, 1
      %p89 = por %p87, %p88
      %p90 = scmp.ne.s32.totalorder %s82, %s85
      %p91 = scmp.eq.s32.totalorder %s30, 0
      %p92 = por %p90, %p91
      %p93 = scmp.ne.s32.totalorder %s82, %s85
      %p94 = scmp.eq.s32.totalorder %s35, 1
      %p95 = por %p93, %p94
      %p96 = scmp.ne.s32.totalorder %s85, %s86
      %p97 = scmp.eq.s32.totalorder %s35, 0
      %p98 = por %p96, %p97
      %p99 = scmp.ne.s32.totalorder %s85, %s86
      %p100 = scmp.eq.s32.totalorder %s36, 1
      %p101 = por %p99, %p100
      %p103 = scmp.ne.s32.totalorder %s86, %s102
      %p104 = scmp.eq.s32.totalorder %s36, 0
      %p105 = por %p103, %p104
      %s106 = ssub.s32 %s38, %s45
      %p107 = scmp.eq.s32.totalorder %s106, 0
      %s109 = sadd.s32 %s108, 1
      %s110 = scalar_select %p107, %s108, %s109
      %p113 = pneg %p107
      %p114 = scmp.eq.s32.totalorder %s30, 1
      %p115 = por %p113, %p114
      %p116 = scmp.ne.s32.totalorder %s108, %s111
      %p117 = scmp.eq.s32.totalorder %s30, 0
      %p118 = por %p116, %p117
      %p119 = scmp.ne.s32.totalorder %s108, %s111
      %p120 = scmp.eq.s32.totalorder %s35, 1
      %p121 = por %p119, %p120
      %p122 = scmp.ne.s32.totalorder %s111, %s112
      %p123 = scmp.eq.s32.totalorder %s35, 0
      %p124 = por %p122, %p123
      %p125 = scmp.ne.s32.totalorder %s111, %s112
      %p126 = scmp.eq.s32.totalorder %s36, 1
      %p127 = por %p125, %p126
      %p129 = scmp.ne.s32.totalorder %s112, %s128
      %p130 = scmp.eq.s32.totalorder %s36, 0
      %p131 = por %p129, %p130
      %s132 = ssub.s32 %s38, %s45
      %p133 = scmp.eq.s32.totalorder %s132, 0
      %s135 = sadd.s32 %s134, 1
      %s136 = scalar_select %p133, %s134, %s135
      %p139 = pneg %p133
      %p140 = scmp.eq.s32.totalorder %s30, 1
      %p141 = por %p139, %p140
      %p142 = scmp.ne.s32.totalorder %s134, %s137
      %p143 = scmp.eq.s32.totalorder %s30, 0
      %p144 = por %p142, %p143
      %p145 = scmp.ne.s32.totalorder %s134, %s137
      %p146 = scmp.eq.s32.totalorder %s35, 1
      %p147 = por %p145, %p146
      %p148 = scmp.ne.s32.totalorder %s137, %s138
      %p149 = scmp.eq.s32.totalorder %s35, 0
      %p150 = por %p148, %p149
      %p151 = scmp.ne.s32.totalorder %s137, %s138
      %p152 = scmp.eq.s32.totalorder %s36, 1
      %p153 = por %p151, %p152
      %p155 = scmp.ne.s32.totalorder %s138, %s154
      %p156 = scmp.eq.s32.totalorder %s36, 0
      %p157 = por %p155, %p156
      %s159 = sadd.s32 %s158, 1
      %p162 = scmp.eq.s32.totalorder %s30, 1
      %p163 = scmp.ne.s32.totalorder %s158, %s160
      %p164 = scmp.eq.s32.totalorder %s30, 0
      %p165 = por %p163, %p164
      %p166 = scmp.ne.s32.totalorder %s158, %s160
      %p167 = scmp.eq.s32.totalorder %s35, 1
      %p168 = por %p166, %p167
      %p169 = scmp.ne.s32.totalorder %s160, %s161
      %p170 = scmp.eq.s32.totalorder %s35, 0
      %p171 = por %p169, %p170
      %p172 = scmp.ne.s32.totalorder %s160, %s161
      %p173 = scmp.eq.s32.totalorder %s36, 1
      %p174 = por %p172, %p173
      %p176 = scmp.ne.s32.totalorder %s161, %s175
      %p177 = scmp.eq.s32.totalorder %s36, 0
      %p178 = por %p176, %p177
      %s180 = sadd.s32 %s179, 1
      %p183 = scmp.eq.s32.totalorder %s30, 1
      %p184 = scmp.ne.s32.totalorder %s179, %s181
      %p185 = scmp.eq.s32.totalorder %s30, 0
      %p186 = por %p184, %p185
      %p187 = scmp.ne.s32.totalorder %s179, %s181
      %p188 = scmp.eq.s32.totalorder %s35, 1
      %p189 = por %p187, %p188
      %p190 = scmp.ne.s32.totalorder %s181, %s182
      %p191 = scmp.eq.s32.totalorder %s35, 0
      %p192 = por %p190, %p191
      %p193 = scmp.ne.s32.totalorder %s181, %s182
      %p194 = scmp.eq.s32.totalorder %s36, 1
      %p195 = por %p193, %p194
      %p197 = scmp.ne.s32.totalorder %s182, %s196
      %p198 = scmp.eq.s32.totalorder %s36, 0
      %p199 = por %p197, %p198
      %s201 = sadd.s32 %s200, 1
      %p204 = scmp.eq.s32.totalorder %s30, 1
      %p205 = scmp.ne.s32.totalorder %s200, %s202
      %p206 = scmp.eq.s32.totalorder %s30, 0
      %p207 = por %p205, %p206
      %p208 = scmp.ne.s32.totalorder %s200, %s202
      %p209 = scmp.eq.s32.totalorder %s35, 1
      %p210 = por %p208, %p209
      %p211 = scmp.ne.s32.totalorder %s202, %s203
      %p212 = scmp.eq.s32.totalorder %s35, 0
      %p213 = por %p211, %p212
      %p214 = scmp.ne.s32.totalorder %s202, %s203
      %p215 = scmp.eq.s32.totalorder %s36, 1
      %p216 = por %p214, %p215
      %p218 = scmp.ne.s32.totalorder %s203, %s217
      %p219 = scmp.eq.s32.totalorder %s36, 0
      %p220 = por %p218, %p219
      %s222 = sadd.s32 %s221, 1
      %p225 = scmp.eq.s32.totalorder %s30, 1
      %p226 = scmp.ne.s32.totalorder %s221, %s223
      %p227 = scmp.eq.s32.totalorder %s30, 0
      %p228 = por %p226, %p227
      %p229 = scmp.ne.s32.totalorder %s221, %s223
      %p230 = scmp.eq.s32.totalorder %s35, 1
      %p231 = por %p229, %p230
      %p232 = scmp.ne.s32.totalorder %s223, %s224
      %p233 = scmp.eq.s32.totalorder %s35, 0
      %p234 = por %p232, %p233
      %p235 = scmp.ne.s32.totalorder %s223, %s224
      %p236 = scmp.eq.s32.totalorder %s36, 1
      %p237 = por %p235, %p236
      %p239 = scmp.ne.s32.totalorder %s224, %s238
      %p240 = scmp.eq.s32.totalorder %s36, 0
      %p241 = por %p239, %p240
      %s242 = ssub.s32 %s37, %s49
      %p243 = scmp.eq.s32.totalorder %s242, 0
      %s245 = sadd.s32 %s244, 1
      %s246 = scalar_select %p243, %s244, %s245
      %p249 = pneg %p243
      %p250 = scmp.eq.s32.totalorder %s30, 1
      %p251 = por %p249, %p250
      %p252 = scmp.ne.s32.totalorder %s244, %s247
      %p253 = scmp.eq.s32.totalorder %s30, 0
      %p254 = por %p252, %p253
      %p255 = scmp.ne.s32.totalorder %s244, %s247
      %p256 = scmp.eq.s32.totalorder %s35, 1
      %p257 = por %p255, %p256
      %p258 = scmp.ne.s32.totalorder %s247, %s248
      %p259 = scmp.eq.s32.totalorder %s35, 0
      %p260 = por %p258, %p259
      %p261 = scmp.ne.s32.totalorder %s247, %s248
      %p262 = scmp.eq.s32.totalorder %s36, 1
      %p263 = por %p261, %p262
      %p265 = scmp.ne.s32.totalorder %s248, %s264
      %p266 = scmp.eq.s32.totalorder %s36, 0
      %p267 = por %p265, %p266
      %s268 = ssub.s32 %s37, %s49
      %p269 = scmp.eq.s32.totalorder %s268, 0
      %s271 = sadd.s32 %s270, 1
      %s272 = scalar_select %p269, %s270, %s271
      %p275 = pneg %p269
      %p276 = scmp.eq.s32.totalorder %s30, 1
      %p277 = por %p275, %p276
      %p278 = scmp.ne.s32.totalorder %s270, %s273
      %p279 = scmp.eq.s32.totalorder %s30, 0
      %p280 = por %p278, %p279
      %p281 = scmp.ne.s32.totalorder %s270, %s273
      %p282 = scmp.eq.s32.totalorder %s35, 1
      %p283 = por %p281, %p282
      %p284 = scmp.ne.s32.totalorder %s273, %s274
      %p285 = scmp.eq.s32.totalorder %s35, 0
      %p286 = por %p284, %p285
      %p287 = scmp.ne.s32.totalorder %s273, %s274
      %p288 = scmp.eq.s32.totalorder %s36, 1
      %p289 = por %p287, %p288
      %p291 = scmp.ne.s32.totalorder %s274, %s290
      %p292 = scmp.eq.s32.totalorder %s36, 0
      %p293 = por %p291, %p292
      %p294 = scmp.le.s32.totalorder 1, %s30
      %p295 = scmp.lt.s32.totalorder %s30, 3
      %p296 = pnand %p294, %p295
      %p297 = pneg %p296
      // Predicated region
      $region9: #{tpu_custom_call.1} parent=5 // pred_check
        _
      $region10: #{tpu_custom_call.1} parent=5 // pred_check_branch
        %299 = sbr.rel (%p296) target = $region12
      $region11: #{tpu_custom_call.1} parent=5 // pred_region
        %s300 = ssub.s32 %s30, 1
        // Predicated region
        $region13: #{tpu_custom_call.1} parent=11 // pred_check
          %p301 = pneg %p124
        $region14: #{tpu_custom_call.1} parent=11 // pred_check_branch
          %303 = sbr.rel (%p301) target = $region16
        $region15: #{tpu_custom_call.1} parent=11 // pred_region
          %s305 = ssub.s32 64, 64
          %306 = vsyncadd [#allocation8], %s305
          %s307 = smul.addr %s40, 64
          %s308 = scalar_lea.hbm %s2, %s307
          %s310 = sshll.u32 [#allocation9], 4
          %s311 = int_to_ptr.vmem [resolvable:$true] %s310
          %313 = dma.hbm_to_vmem [thread:$0]  %s308, 64, %s311, [#allocation8]
        $region16: #{tpu_custom_call.1} parent=11 // pred_fallthru
          _
        // Predicated region
        $region17: #{tpu_custom_call.1} parent=11 // pred_check
          %p314 = pneg %p150
        $region18: #{tpu_custom_call.1} parent=11 // pred_check_branch
          %316 = sbr.rel (%p314) target = $region20
        $region19: #{tpu_custom_call.1} parent=11 // pred_region
          %s318 = ssub.s32 64, 64
          %319 = vsyncadd [#allocation11], %s318
          %s320 = smul.addr %s40, 64
          %s321 = scalar_lea.hbm %s3, %s320
          %s323 = sshll.u32 [#allocation10], 4
          %s324 = int_to_ptr.vmem [resolvable:$true] %s323
          %326 = dma.hbm_to_vmem [thread:$0]  %s321, 64, %s324, [#allocation11]
        $region20: #{tpu_custom_call.1} parent=11 // pred_fallthru
          _
        // Predicated region
        $region21: #{tpu_custom_call.1} parent=11 // pred_check
          %p327 = pneg %p171
        $region22: #{tpu_custom_call.1} parent=11 // pred_check_branch
          %329 = sbr.rel (%p327) target = $region24
        $region23: #{tpu_custom_call.1} parent=11 // pred_region
          %s331 = ssub.s32 256, 256
          %332 = vsyncadd [#allocation11], %s331
          %s333 = sshll.u32 [#allocation12], 4
          %s334 = int_to_ptr.vmem [resolvable:$true] %s333
          %339 = dma.hbm_to_vmem [thread:$0]  %s4, 256, %s334, [#allocation11], 64, 64, 4
        $region24: #{tpu_custom_call.1} parent=11 // pred_fallthru
          _
        // Predicated region
        $region25: #{tpu_custom_call.1} parent=11 // pred_check
          %p340 = pneg %p192
        $region26: #{tpu_custom_call.1} parent=11 // pred_check_branch
          %342 = sbr.rel (%p340) target = $region28
        $region27: #{tpu_custom_call.1} parent=11 // pred_region
          _
        $region28: #{tpu_custom_call.1} parent=11 // pred_fallthru
          _
        // Predicated region
        $region29: #{tpu_custom_call.1} parent=11 // pred_check
          %p343 = pneg %p213
        $region30: #{tpu_custom_call.1} parent=11 // pred_check_branch
          %345 = sbr.rel (%p343) target = $region32
        $region31: #{tpu_custom_call.1} parent=11 // pred_region
          %s347 = ssub.s32 256, 256
          %348 = vsyncadd [#allocation14], %s347
          %s349 = sshll.u32 [#allocation13], 4
          %s350 = int_to_ptr.vmem [resolvable:$true] %s349
          %355 = dma.hbm_to_vmem [thread:$0]  %s6, 256, %s350, [#allocation14], 64, 64, 4
        $region32: #{tpu_custom_call.1} parent=11 // pred_fallthru
          _
        // Predicated region
        $region33: #{tpu_custom_call.1} parent=11 // pred_check
          %p356 = pneg %p234
        $region34: #{tpu_custom_call.1} parent=11 // pred_check_branch
          %358 = sbr.rel (%p356) target = $region36
        $region35: #{tpu_custom_call.1} parent=11 // pred_region
          %s360 = ssub.s32 128, 128
          %361 = vsyncadd [#allocation14], %s360
          %s363 = sshll.u32 [#allocation15], 4
          %s364 = int_to_ptr.vmem [resolvable:$true] %s363
          %366 = dma.hbm_to_vmem [thread:$0]  %s7, 128, %s364, [#allocation14]
        $region36: #{tpu_custom_call.1} parent=11 // pred_fallthru
          _
      $region12: #{tpu_custom_call.1} parent=5 // pred_fallthru
        _
      %p367 = scmp.lt.s32.totalorder %s30, 2
      // Predicated region
      $region37: #{tpu_custom_call.1} parent=5 // pred_check
        %p368 = pneg %p367
      $region38: #{tpu_custom_call.1} parent=5 // pred_check_branch
        %370 = sbr.rel (%p368) target = $region40
      $region39: #{tpu_custom_call.1} parent=5 // pred_region
        // Predicated region
        $region41: #{tpu_custom_call.1} parent=39 // pred_check
          %p371 = pneg %p64
        $region42: #{tpu_custom_call.1} parent=39 // pred_check_branch
          %373 = sbr.rel (%p371) target = $region44
        $region43: #{tpu_custom_call.1} parent=39 // pred_region
          %s374 = sand.u32 %s54, 1
          %s375 = scalar_lea.sflag [#allocation5], %s374
          %s376 = sand.u32 %s54, 1
          %s377 = smul.addr %s376, 16
          %s378 = scalar_lea.vmem [#allocation4], %s377
          %s379 = smul.u32 2, %s38
          %s381 = ssub.s32 256, 256
          %382 = vsyncadd %s375, %s381
          %s383 = smul.addr %s37, 2
          %s384 = sadd.s32 %s379, %s383
          %s385 = smul.addr %s384, 128
          %s386 = scalar_lea.hbm %s0, %s385
          %s387 = sshll.u32 %s378, 4
          %s388 = int_to_ptr.vmem [resolvable:$true] %s387
          %393 = dma.hbm_to_vmem [thread:$0]  %s386, 256, %s388, %s375, 128, 128, 8
        $region44: #{tpu_custom_call.1} parent=39 // pred_fallthru
          _
        // Predicated region
        $region45: #{tpu_custom_call.1} parent=39 // pred_check
          %p394 = pneg %p92
        $region46: #{tpu_custom_call.1} parent=39 // pred_check_branch
          %396 = sbr.rel (%p394) target = $region48
        $region47: #{tpu_custom_call.1} parent=39 // pred_region
          %s397 = sand.u32 %s30, 1
          %s398 = scalar_lea.sflag [#allocation8], %s397
          %s399 = sand.u32 %s82, 1
          %s400 = smul.addr %s399, 16
          %s401 = scalar_lea.vmem [#allocation7], %s400
          %s402 = smul.u32 2, %s38
          %s404 = ssub.s32 256, 256
          %405 = vsyncadd %s398, %s404
          %s406 = smul.addr %s37, 2
          %s407 = sadd.s32 %s402, %s406
          %s408 = smul.addr %s407, 128
          %s409 = scalar_lea.hbm %s1, %s408
          %s410 = sshll.u32 %s401, 4
          %s411 = int_to_ptr.vmem [resolvable:$true] %s410
          %416 = dma.hbm_to_vmem [thread:$0]  %s409, 256, %s411, %s398, 128, 128, 8
        $region48: #{tpu_custom_call.1} parent=39 // pred_fallthru
          _
      $region40: #{tpu_custom_call.1} parent=5 // pred_fallthru
        _
      %p417 = scmp.le.s32.totalorder 1, %s30
      %p418 = scmp.lt.s32.totalorder %s30, 3
      %p419 = pnand %p417, %p418
      %p420 = pneg %p419
      // Predicated region
      $region49: #{tpu_custom_call.1} parent=5 // pred_check
        _
      $region50: #{tpu_custom_call.1} parent=5 // pred_check_branch
        %422 = sbr.rel (%p419) target = $region52
      $region51: #{tpu_custom_call.1} parent=5 // pred_region
        %s423 = ssub.s32 %s30, 1
        %s424 = sand.u32 %s57, 1
        %s425 = scalar_lea.sflag [#allocation5], %s424
        %s426 = sand.u32 %s57, 1
        %s427 = smul.addr %s426, 16
        %s428 = scalar_lea.vmem [#allocation4], %s427
        // Predicated region
        $region53: #{tpu_custom_call.1} parent=51 // pred_check
          %p429 = pneg %p70
        $region54: #{tpu_custom_call.1} parent=51 // pred_check_branch
          %431 = sbr.rel (%p429) target = $region56
        $region55: #{tpu_custom_call.1} parent=51 // pred_region
          %432 = dma.done %s425, 256
        $region56: #{tpu_custom_call.1} parent=51 // pred_fallthru
          _
        %s433 = sand.u32 %s35, 1
        %s434 = scalar_lea.sflag [#allocation8], %s433
        %s435 = sand.u32 %s85, 1
        %s436 = smul.addr %s435, 16
        %s437 = scalar_lea.vmem [#allocation7], %s436
        // Predicated region
        $region57: #{tpu_custom_call.1} parent=51 // pred_check
          %p438 = pneg %p98
        $region58: #{tpu_custom_call.1} parent=51 // pred_check_branch
          %440 = sbr.rel (%p438) target = $region60
        $region59: #{tpu_custom_call.1} parent=51 // pred_region
          %441 = dma.done %s434, 256
        $region60: #{tpu_custom_call.1} parent=51 // pred_fallthru
          _
        // Predicated region
        $region61: #{tpu_custom_call.1} parent=51 // pred_check
          %p442 = pneg %p124
        $region62: #{tpu_custom_call.1} parent=51 // pred_check_branch
          %444 = sbr.rel (%p442) target = $region64
        $region63: #{tpu_custom_call.1} parent=51 // pred_region
          %445 = dma.done [#allocation8], 64
        $region64: #{tpu_custom_call.1} parent=51 // pred_fallthru
          _
        // Predicated region
        $region65: #{tpu_custom_call.1} parent=51 // pred_check
          %p446 = pneg %p150
        $region66: #{tpu_custom_call.1} parent=51 // pred_check_branch
          %448 = sbr.rel (%p446) target = $region68
        $region67: #{tpu_custom_call.1} parent=51 // pred_region
          %449 = dma.done [#allocation11], 64
        $region68: #{tpu_custom_call.1} parent=51 // pred_fallthru
          _
        // Predicated region
        $region69: #{tpu_custom_call.1} parent=51 // pred_check
          %p450 = pneg %p171
        $region70: #{tpu_custom_call.1} parent=51 // pred_check_branch
          %452 = sbr.rel (%p450) target = $region72
        $region71: #{tpu_custom_call.1} parent=51 // pred_region
          %453 = dma.done [#allocation11], 256
        $region72: #{tpu_custom_call.1} parent=51 // pred_fallthru
          _
        // Predicated region
        $region73: #{tpu_custom_call.1} parent=51 // pred_check
          %p454 = pneg %p213
        $region74: #{tpu_custom_call.1} parent=51 // pred_check_branch
          %456 = sbr.rel (%p454) target = $region76
        $region75: #{tpu_custom_call.1} parent=51 // pred_region
          %457 = dma.done [#allocation14], 256
        $region76: #{tpu_custom_call.1} parent=51 // pred_fallthru
          _
        // Predicated region
        $region77: #{tpu_custom_call.1} parent=51 // pred_check
          %p458 = pneg %p234
        $region78: #{tpu_custom_call.1} parent=51 // pred_check_branch
          %460 = sbr.rel (%p458) target = $region80
        $region79: #{tpu_custom_call.1} parent=51 // pred_region
          %461 = dma.done [#allocation14], 128
        $region80: #{tpu_custom_call.1} parent=51 // pred_fallthru
          _
        %s462 = sand.u32 %s57, 1
        %s463 = scalar_lea.sflag [#allocation5], %s462
        %s464 = sand.u32 %s57, 1
        %s465 = smul.addr %s464, 16
        %s466 = scalar_lea.vmem [#allocation4], %s465
        %p467 = pneg %p70
        %p468 = pneg %p67
        %s469 = sand.u32 %s35, 1
        %s470 = scalar_lea.sflag [#allocation8], %s469
        %s471 = sand.u32 %s85, 1
        %s472 = smul.addr %s471, 16
        %s473 = scalar_lea.vmem [#allocation7], %s472
        %p474 = pneg %p98
        %p475 = pneg %p95
        %p476 = pneg %p124
        %p477 = pneg %p121
        %p478 = pneg %p150
        %p479 = pneg %p147
        %p480 = pneg %p171
        %p481 = pneg %p168
        %p482 = pneg %p192
        %p483 = pneg %p189
        %p484 = pneg %p213
        %p485 = pneg %p210
        %p486 = pneg %p234
        %p487 = pneg %p231
        %p488 = pneg %p260
        %p489 = pneg %p257
        %s490 = sand.u32 %s247, 1
        %s491 = scalar_lea.sflag [#allocation6], %s490
        %s492 = sand.u32 %s247, 1
        %s493 = smul.addr %s492, 8
        %s494 = scalar_lea.vmem [#allocation16], %s493
        %p495 = pneg %p286
        %p496 = pneg %p283
        %s497 = sand.u32 %s273, 1
        %s498 = scalar_lea.sflag [#allocation18], %s497
        %s499 = sand.u32 %s273, 1
        %s500 = smul.addr %s499, 8
        %s501 = scalar_lea.vmem [#allocation17], %s500
        %s502 = smul.u32 2, %s40
        %s503 = smul.u32 2, %s40
        %p505 = scmp.eq.s32.totalorder %s40, 0
        // Predicated region
        $region81: #{tpu_custom_call.1} parent=51 // pred_check
          %p506 = pneg %p505
        $region82: #{tpu_custom_call.1} parent=51 // pred_check_branch
          %508 = sbr.rel (%p506) target = $region84
        $region83: #{tpu_custom_call.1} parent=51 // pred_region
          %vm509 = vcmask 261120
          %510 = vst.msk [vmem:[#allocation2] sm:$0xff] %vm509, 0.0
          %511 = vst.msk [vmem:[#allocation3] sm:$0xff] %vm509, 0.0
        $region84: #{tpu_custom_call.1} parent=51 // pred_fallthru
          _
        %v512 = vld [vmem:[%s428] sm:$0xff]
        %v513 = vld [vmem:[%s428 + $0x8] sm:$0xff]
        %v514 = vpack.c.bf16 %v513, %v512
        %v515 = vld [vmem:[%s437] sm:$0xff]
        %v516 = vld [vmem:[%s437 + $0x8] sm:$0xff]
        %v517 = vpack.c.bf16 %v516, %v515
        %v518 = vld [vmem:[#allocation2] sm:$0xff]
        %v519 = vld [vmem:[#allocation9] sm:$0xf]
        %vm520 = vcmask 130048
        %v522 = vsel %vm520, %v519, 0
        %524 = vmatprep.subr.bf16.mxu0 0
        %525 = vmatpush1.bf16.msra.mxu0 0
        %526 = vmatprep.subr.bf16.mxu0 0
        %527 = vmatpush1.bf16.msra.mxu0 0
        %528 = vmatprep.subr.bf16.mxu0 0
        %529 = vmatpush1.bf16.msra.mxu0 0
        %530 = vmatprep.subr.bf16.mxu0 0
        %531 = vmatpush1.bf16.msra.mxu0 0
        %532 = vmatprep.subr.bf16.mxu0 0
        %533 = vmatpush1.bf16.msra.mxu0 0
        %534 = vmatprep.subr.bf16.mxu0 0
        %535 = vmatpush1.bf16.msra.mxu0 0
        %536 = vmatprep.subr.bf16.mxu0 0
        %537 = vmatpush1.bf16.msra.mxu0 0
        %538 = vmatprep.subr.bf16.mxu0 0
        %539 = vmatpush1.bf16.msra.mxu0 %v514
        %540 = vmatprep.subr.bf16.mxu0 0
        %541 = vmatpush2.bf16.msra.mxu0 0
        %542 = vmatprep.subr.bf16.mxu0 0
        %543 = vmatpush2.bf16.msra.mxu0 0
        %544 = vmatprep.subr.bf16.mxu0 0
        %545 = vmatpush2.bf16.msra.mxu0 0
        %546 = vmatprep.subr.bf16.mxu0 0
        %547 = vmatpush2.bf16.msra.mxu0 0
        %548 = vmatprep.subr.bf16.mxu0 0
        %549 = vmatpush2.bf16.msra.mxu0 0
        %550 = vmatprep.subr.bf16.mxu0 0
        %551 = vmatpush2.bf16.msra.mxu0 0
        %552 = vmatprep.subr.bf16.mxu0 0
        %553 = vmatpush2.bf16.msra.mxu0 0
        %554 = vmatprep.subr.bf16.mxu0 0
        %555 = vmatpush2.bf16.msra.mxu0 0
        %556 = vmatprep.mubr.bf16.mxu0 0
        %557 = vmatmul.mubr.bf16.gmra.mxu0 %v522
        %v558 = vpop.f32.mrf.mxu0
        %v559 = vadd.f32 0.0, %v558
        %v560 = vpop.f32.mrf.mxu0
        %v561 = vpop.f32.mrf.mxu0
        %v562 = vpop.f32.mrf.mxu0
        %563 = vdwg.mxu0
        %v564 = vadd.f32 %v518, %v559
        %vm565 = vcmask 261120
        %566 = vst.msk [vmem:[#allocation2] sm:$0xff] %vm565, %v564
        %v567 = vld [vmem:[#allocation3] sm:$0xff]
        %v568 = vld [vmem:[#allocation10] sm:$0xf]
        %v570 = vsel %vm520, %v568, 0
        %572 = vmatprep.subr.bf16.mxu0 0
        %573 = vmatpush1.bf16.msra.mxu0 0
        %574 = vmatprep.subr.bf16.mxu0 0
        %575 = vmatpush1.bf16.msra.mxu0 0
        %576 = vmatprep.subr.bf16.mxu0 0
        %577 = vmatpush1.bf16.msra.mxu0 0
        %578 = vmatprep.subr.bf16.mxu0 0
        %579 = vmatpush1.bf16.msra.mxu0 0
        %580 = vmatprep.subr.bf16.mxu0 0
        %581 = vmatpush1.bf16.msra.mxu0 0
        %582 = vmatprep.subr.bf16.mxu0 0
        %583 = vmatpush1.bf16.msra.mxu0 0
        %584 = vmatprep.subr.bf16.mxu0 0
        %585 = vmatpush1.bf16.msra.mxu0 0
        %586 = vmatprep.subr.bf16.mxu0 0
        %587 = vmatpush1.bf16.msra.mxu0 %v517
        %588 = vmatprep.subr.bf16.mxu0 0
        %589 = vmatpush2.bf16.msra.mxu0 0
        %590 = vmatprep.subr.bf16.mxu0 0
        %591 = vmatpush2.bf16.msra.mxu0 0
        %592 = vmatprep.subr.bf16.mxu0 0
        %593 = vmatpush2.bf16.msra.mxu0 0
        %594 = vmatprep.subr.bf16.mxu0 0
        %595 = vmatpush2.bf16.msra.mxu0 0
        %596 = vmatprep.subr.bf16.mxu0 0
        %597 = vmatpush2.bf16.msra.mxu0 0
        %598 = vmatprep.subr.bf16.mxu0 0
        %599 = vmatpush2.bf16.msra.mxu0 0
        %600 = vmatprep.subr.bf16.mxu0 0
        %601 = vmatpush2.bf16.msra.mxu0 0
        %602 = vmatprep.subr.bf16.mxu0 0
        %603 = vmatpush2.bf16.msra.mxu0 0
        %604 = vmatprep.mubr.bf16.mxu0 0
        %605 = vmatmul.mubr.bf16.gmra.mxu0 %v570
        %v606 = vpop.f32.mrf.mxu0
        %v607 = vadd.f32 0.0, %v606
        %v608 = vpop.f32.mrf.mxu0
        %v609 = vpop.f32.mrf.mxu0
        %v610 = vpop.f32.mrf.mxu0
        %611 = vdwg.mxu0
        %v612 = vadd.f32 %v567, %v607
        %613 = vst.msk [vmem:[#allocation3] sm:$0xff] %vm565, %v612
        // Predicated region
        $region85: #{tpu_custom_call.1} parent=51 // pred_check
          %p614 = pneg %p505
        $region86: #{tpu_custom_call.1} parent=51 // pred_check_branch
          %616 = sbr.rel (%p614) target = $region88
        $region87: #{tpu_custom_call.1} parent=51 // pred_region
          %v617 = vld [vmem:[#allocation2] sm:$0xff]
          %v618 = vpack.c.bf16 %v617, %v617
          %v619 = vld [vmem:[#allocation12] sm:$0xf]
          %v620 = vld [vmem:[#allocation12 + $0x4] sm:$0xf]
          %v621 = vld [vmem:[#allocation12 + $0x8] sm:$0xf]
          %v622 = vld [vmem:[#allocation12 + $0xc] sm:$0xf]
          %v623 = vld [vmem:[%s5] sm:$0xff]
          %v628 = vunpack.c.l.b16 %v619
          %v629 = vunpack.c.l.b16 %v620
          %v630 = vunpack.c.l.b16 %v621
          %v631 = vunpack.c.l.b16 %v622
          %v632 = vpack.c.b16 %v629, %v628
          %v633 = vpack.c.b16 %v631, %v630
          %v637 = vsel %vm565, %v618, 0
          %639 = vmatprep.subr.bf16.mxu0 0
          %640 = vmatpush1.bf16.msra.mxu0 0
          %641 = vmatprep.subr.bf16.mxu0 0
          %642 = vmatpush1.bf16.msra.mxu0 0
          %643 = vmatprep.subr.bf16.mxu0 0
          %644 = vmatpush1.bf16.msra.mxu0 0
          %645 = vmatprep.subr.bf16.mxu0 0
          %646 = vmatpush1.bf16.msra.mxu0 0
          %647 = vmatprep.subr.bf16.mxu0 0
          %648 = vmatpush1.bf16.msra.mxu0 0
          %649 = vmatprep.subr.bf16.mxu0 0
          %650 = vmatpush1.bf16.msra.mxu0 0
          %651 = vmatprep.subr.bf16.mxu0 0
          %652 = vmatpush1.bf16.msra.mxu0 %v633
          %653 = vmatprep.subr.bf16.mxu0 0
          %654 = vmatpush1.bf16.msra.mxu0 %v632
          %655 = vmatprep.subr.bf16.mxu0 0
          %656 = vmatpush2.bf16.msra.mxu0 0
          %657 = vmatprep.subr.bf16.mxu0 0
          %658 = vmatpush2.bf16.msra.mxu0 0
          %659 = vmatprep.subr.bf16.mxu0 0
          %660 = vmatpush2.bf16.msra.mxu0 0
          %661 = vmatprep.subr.bf16.mxu0 0
          %662 = vmatpush2.bf16.msra.mxu0 0
          %663 = vmatprep.subr.bf16.mxu0 0
          %664 = vmatpush2.bf16.msra.mxu0 0
          %665 = vmatprep.subr.bf16.mxu0 0
          %666 = vmatpush2.bf16.msra.mxu0 0
          %667 = vmatprep.subr.bf16.mxu0 0
          %668 = vmatpush2.bf16.msra.mxu0 0
          %669 = vmatprep.subr.bf16.mxu0 0
          %670 = vmatpush2.bf16.msra.mxu0 0
          %671 = vmatprep.mubr.bf16.mxu0 0
          %672 = vmatmul.mubr.bf16.gmra.mxu0 %v637
          %v673 = vpop.f32.mrf.mxu0
          %v674 = vadd.f32 %v623, %v673
          %v675 = vpop.f32.mrf.mxu0
          %v676 = vpop.f32.mrf.mxu0
          %v677 = vpop.f32.mrf.mxu0
          %678 = vdwg.mxu0
          %679 = vst.msk [vmem:[%s494] sm:$0xff] %vm565, %v674
          %v680 = vld [vmem:[#allocation3] sm:$0xff]
          %v681 = vpack.c.bf16 %v680, %v680
          %v682 = vld [vmem:[#allocation13] sm:$0xf]
          %v683 = vld [vmem:[#allocation13 + $0x4] sm:$0xf]
          %v684 = vld [vmem:[#allocation13 + $0x8] sm:$0xf]
          %v685 = vld [vmem:[#allocation13 + $0xc] sm:$0xf]
          %v686 = vld [vmem:[#allocation15] sm:$0xff]
          %v691 = vunpack.c.l.b16 %v682
          %v692 = vunpack.c.l.b16 %v683
          %v693 = vunpack.c.l.b16 %v684
          %v694 = vunpack.c.l.b16 %v685
          %v695 = vpack.c.b16 %v692, %v691
          %v696 = vpack.c.b16 %v694, %v693
          %v700 = vsel %vm565, %v681, 0
          %702 = vmatprep.subr.bf16.mxu0 0
          %703 = vmatpush1.bf16.msra.mxu0 0
          %704 = vmatprep.subr.bf16.mxu0 0
          %705 = vmatpush1.bf16.msra.mxu0 0
          %706 = vmatprep.subr.bf16.mxu0 0
          %707 = vmatpush1.bf16.msra.mxu0 0
          %708 = vmatprep.subr.bf16.mxu0 0
          %709 = vmatpush1.bf16.msra.mxu0 0
          %710 = vmatprep.subr.bf16.mxu0 0
          %711 = vmatpush1.bf16.msra.mxu0 0
          %712 = vmatprep.subr.bf16.mxu0 0
          %713 = vmatpush1.bf16.msra.mxu0 0
          %714 = vmatprep.subr.bf16.mxu0 0
          %715 = vmatpush1.bf16.msra.mxu0 %v696
          %716 = vmatprep.subr.bf16.mxu0 0
          %717 = vmatpush1.bf16.msra.mxu0 %v695
          %718 = vmatprep.subr.bf16.mxu0 0
          %719 = vmatpush2.bf16.msra.mxu0 0
          %720 = vmatprep.subr.bf16.mxu0 0
          %721 = vmatpush2.bf16.msra.mxu0 0
          %722 = vmatprep.subr.bf16.mxu0 0
          %723 = vmatpush2.bf16.msra.mxu0 0
          %724 = vmatprep.subr.bf16.mxu0 0
          %725 = vmatpush2.bf16.msra.mxu0 0
          %726 = vmatprep.subr.bf16.mxu0 0
          %727 = vmatpush2.bf16.msra.mxu0 0
          %728 = vmatprep.subr.bf16.mxu0 0
          %729 = vmatpush2.bf16.msra.mxu0 0
          %730 = vmatprep.subr.bf16.mxu0 0
          %731 = vmatpush2.bf16.msra.mxu0 0
          %732 = vmatprep.subr.bf16.mxu0 0
          %733 = vmatpush2.bf16.msra.mxu0 0
          %734 = vmatprep.mubr.bf16.mxu0 0
          %735 = vmatmul.mubr.bf16.gmra.mxu0 %v700
          %v736 = vpop.f32.mrf.mxu0
          %v737 = vadd.f32 %v686, %v736
          %v738 = vpop.f32.mrf.mxu0
          %v739 = vpop.f32.mrf.mxu0
          %v740 = vpop.f32.mrf.mxu0
          %741 = vdwg.mxu0
          %742 = vst.msk [vmem:[%s501] sm:$0xff] %vm565, %v737
        $region88: #{tpu_custom_call.1} parent=51 // pred_fallthru
          _
        %s743 = sand.u32 %s247, 1
        %s744 = scalar_lea.sflag [#allocation6], %s743
        %s745 = sand.u32 %s247, 1
        %s746 = smul.addr %s745, 8
        %s747 = scalar_lea.vmem [#allocation16], %s746
        %s748 = sand.u32 %s273, 1
        %s749 = scalar_lea.sflag [#allocation18], %s748
        %s750 = sand.u32 %s273, 1
        %s751 = smul.addr %s750, 8
        %s752 = scalar_lea.vmem [#allocation17], %s751
        // Predicated region
        $region89: #{tpu_custom_call.1} parent=51 // pred_check
          %p753 = pneg %p257
        $region90: #{tpu_custom_call.1} parent=51 // pred_check_branch
          %755 = sbr.rel (%p753) target = $region92
        $region91: #{tpu_custom_call.1} parent=51 // pred_region
          %s757 = ssub.s32 128, 128
          %758 = vsyncadd %s744, %s757
          %s759 = smul.addr %s39, 128
          %s760 = scalar_lea.hbm %s8, %s759
          %s762 = sshll.u32 %s747, 4
          %s763 = int_to_ptr.vmem [resolvable:$true] %s762
          %765 = dma.vmem_to_hbm [thread:$0]  %s763, 128, %s760, %s744
        $region92: #{tpu_custom_call.1} parent=51 // pred_fallthru
          _
        // Predicated region
        $region93: #{tpu_custom_call.1} parent=51 // pred_check
          %p766 = pneg %p283
        $region94: #{tpu_custom_call.1} parent=51 // pred_check_branch
          %768 = sbr.rel (%p766) target = $region96
        $region95: #{tpu_custom_call.1} parent=51 // pred_region
          %s770 = ssub.s32 128, 128
          %771 = vsyncadd %s749, %s770
          %s772 = smul.addr %s39, 128
          %s773 = scalar_lea.hbm %s9, %s772
          %s775 = sshll.u32 %s752, 4
          %s776 = int_to_ptr.vmem [resolvable:$true] %s775
          %778 = dma.vmem_to_hbm [thread:$0]  %s776, 128, %s773, %s749
        $region96: #{tpu_custom_call.1} parent=51 // pred_fallthru
          _
      $region52: #{tpu_custom_call.1} parent=5 // pred_fallthru
        _
      %p779 = scmp.le.s32.totalorder 2, %s30
      // Predicated region
      $region97: #{tpu_custom_call.1} parent=5 // pred_check
        %p780 = pneg %p779
      $region98: #{tpu_custom_call.1} parent=5 // pred_check_branch
        %782 = sbr.rel (%p780) target = $region100
      $region99: #{tpu_custom_call.1} parent=5 // pred_region
        %s783 = ssub.s32 %s30, 2
        // Predicated region
        $region101: #{tpu_custom_call.1} parent=99 // pred_check
          %p784 = pneg %p263
        $region102: #{tpu_custom_call.1} parent=99 // pred_check_branch
          %786 = sbr.rel (%p784) target = $region104
        $region103: #{tpu_custom_call.1} parent=99 // pred_region
          %s787 = sand.u32 %s248, 1
          %s788 = scalar_lea.sflag [#allocation6], %s787
          %s789 = sand.u32 %s248, 1
          %s790 = smul.addr %s789, 8
          %s791 = scalar_lea.vmem [#allocation16], %s790
          %792 = dma.done %s788, 128
        $region104: #{tpu_custom_call.1} parent=99 // pred_fallthru
          _
        // Predicated region
        $region105: #{tpu_custom_call.1} parent=99 // pred_check
          %p793 = pneg %p289
        $region106: #{tpu_custom_call.1} parent=99 // pred_check_branch
          %795 = sbr.rel (%p793) target = $region108
        $region107: #{tpu_custom_call.1} parent=99 // pred_region
          %s796 = sand.u32 %s274, 1
          %s797 = scalar_lea.sflag [#allocation18], %s796
          %s798 = sand.u32 %s274, 1
          %s799 = smul.addr %s798, 8
          %s800 = scalar_lea.vmem [#allocation17], %s799
          %801 = dma.done %s797, 128
        $region108: #{tpu_custom_call.1} parent=99 // pred_fallthru
          _
      $region100: #{tpu_custom_call.1} parent=5 // pred_fallthru
        _
    $region6: #{tpu_custom_call.1} parent=1 // loop_footer
      %s34 = sadd.s32 1, %s30
    $region7: #{tpu_custom_call.1} parent=1 // loop_footer_branch
      %29 = sbr.rel target = $region3
    $region8: #{tpu_custom_call.1} parent=1 // loop_exit
      _
    %802 = vsyncpa [#allocation5], 1
    %s803 = scalar_lea.sflag [#allocation5], 1
    %804 = vsyncpa %s803, 1
    %805 = vsyncpa [#allocation8], 1
    %s806 = scalar_lea.sflag [#allocation8], 1
    %807 = vsyncpa %s806, 1
    %808 = vsyncpa [#allocation11], 1
    %809 = vsyncpa [#allocation14], 1
    %810 = vsyncpa [#allocation6], 1
    %s811 = scalar_lea.sflag [#allocation6], 1
    %812 = vsyncpa %s811, 1
    %813 = vsyncpa [#allocation18], 1
    %s814 = scalar_lea.sflag [#allocation18], 1
    %815 = vsyncpa %s814, 1

</llo_original>
